<compile_context>
chip_gen: v6e
topology: v6e:2x2x1
jax: 0.10.0
libtpu: 0.0.40
codegen_flags: <defaults>
</compile_context>

<pallas_src>
import jax
import jax.numpy as jnp
from jax.experimental import pallas as pl
from jax.experimental.pallas import tpu as pltpu


def _round_up(x, m):
    return ((x + m - 1) // m) * m


def _round_down(x, m):
    return (x // m) * m


def attention_kernel(h_ref, att_feats_ref, p_att_ref,
                     w_h_ref, b_h_ref, w_a_ref,
                     out_ref):
    # att_h = h2att(h)  -> (TB, att_hid).  bf16 MXU inputs, f32 accumulation.
    att_h = jnp.dot(h_ref[...], w_h_ref[...],
                    preferred_element_type=jnp.float32) + b_h_ref[...]

    # dot = tanh(p_att + att_h)  -> (TB, att_size, att_hid), f32.
    # TODO(synk): if re-profiling after the bf16-streaming change shows the EUP
    # binding on v6e/v7x, a bf16 tanh path (or att_hid-chunked fori_loop score
    # accumulation) can shave the largest transcendental load; kept f32 here.
    dot = jnp.tanh(p_att_ref[...].astype(jnp.float32) + att_h[:, None, :])

    # alpha_net: VPU multiply + lane reduction over att_hid (avoids N=1 matmul).
    # b_alpha is omitted: it cancels through the softmax.
    score = jnp.sum(dot * w_a_ref[...], axis=-1)            # (TB, att_size) f32

    # Softmax over att_size (matches F.softmax on the (B, att_size) view).
    m = jnp.max(score, axis=-1, keepdims=True)
    e = jnp.exp(score - m)
    denom = jnp.sum(e, axis=-1, keepdims=True)
    weight = e * pl.reciprocal(denom, approx=True)          # (TB, att_size)

    # att_res = bmm(weight, att_feats)  -> (TB, rnn).  Batched MXU contraction,
    # bf16 inputs, f32 accumulation.
    att_res = jnp.einsum('bqk,bkd->bqd',
                         weight[:, None, :].astype(att_feats_ref.dtype),
                         att_feats_ref[...],
                         preferred_element_type=jnp.float32)[:, 0, :]
    out_ref[...] = att_res.astype(out_ref.dtype)


def _vmem_budget_and_limit():
    """Derive (tile-sizing budget, scoped-VMEM limit) from the actual chip.

    v5e/v6e have ~128 MiB VMEM per TensorCore, v7x ~64 MiB; fall back to the
    conservative 64 MiB if the query is unavailable.
    """
    cap = None
    try:
        cap = getattr(pltpu.get_tpu_info(), "vmem_capacity_bytes", None)
    except Exception:
        cap = None
    if not cap:
        cap = 64 * 1024 * 1024
    budget = int(cap * 0.70)   # what the tile picker sizes against
    limit = int(cap * 0.90)    # scoped-VMEM limit handed to Mosaic
    return budget, limit


def _pick_tile_b(B, att_size, rnn, att_hid, stream_bytes, vmem_budget):
    """Batch tile: multiple of 8, sized against real per-step VMEM usage, and
    capped so the grid keeps >= 2-4 steps when the batch allows it (megacore
    sharding on v7x + enough steps to hide DMA)."""
    b_pad8 = _round_up(B, 8)

    # Per-batch-row VMEM bytes live at one grid step.
    per_example = (
        2 * att_size * (rnn + att_hid) * stream_bytes   # att_feats + p_att, double-buffered
        + 2 * rnn * stream_bytes                        # h, double-buffered
        + 2 * rnn * 4                                   # f32 output tile, double-buffered
        + 2 * att_size * att_hid * 4                    # f32 'dot' intermediate (+ upcast temp)
        + 4 * att_size * 4                              # score / exp / weight temporaries
    )
    # Fixed cost: double-buffered weights (counted at 4 B/elem, conservative)
    # + headroom for compiler-internal scratch.
    fixed = 2 * (rnn * att_hid + 2 * att_hid) * 4 + (2 << 20)

    max_tb = max(8, (vmem_budget - fixed) // max(per_example, 1))

    # Keep grid >= min(4, ceil(B/8)) steps so the "parallel" axis can shard
    # across TensorCores and the pipeline stays busy.
    min_grid = min(4, max(1, b_pad8 // 8))
    grid_cap = b_pad8 if min_grid <= 1 else max(8, _round_down(b_pad8 // min_grid, 8))

    tb = min(max_tb, grid_cap, b_pad8, 1024)
    return max(8, _round_down(tb, 8))


def attention_forward(h, att_feats, p_att_feats,
                      w_h2att, b_h2att, w_alpha, b_alpha=None,
                      tile_b=None, stream_dtype=jnp.bfloat16):
    """
    h           : (B, rnn)
    att_feats   : (B, att_size, rnn)
    p_att_feats : (B, att_size, att_hid)
    w_h2att     : (att_hid, rnn)   (PyTorch Linear weight layout)
    b_h2att     : (att_hid,)
    w_alpha     : (1, att_hid)
    b_alpha     : (1,)  -- accepted for API parity; mathematically a no-op
                          through the softmax, so it is not sent to the kernel.
    stream_dtype: dtype used to stream h / att_feats / p_att_feats / w_h2att
                  through HBM (bf16 default; compute accumulates in f32).
    """
    B, att_size, rnn = att_feats.shape
    att_hid = p_att_feats.shape[-1]

    stream_dtype = jnp.dtype(stream_dtype)
    stream_bytes = stream_dtype.itemsize

    # Weights in matmul-friendly (in, out) layout; small biases / alpha row f32.
    w_h = jnp.asarray(w_h2att).T.astype(stream_dtype)                    # (rnn, att_hid)
    b_h = jnp.asarray(b_h2att).reshape(1, att_hid).astype(jnp.float32)
    w_a = jnp.asarray(w_alpha).reshape(1, att_hid).astype(jnp.float32)

    vmem_budget, vmem_limit = _vmem_budget_and_limit()
    if tile_b is None:
        tile_b = _pick_tile_b(B, att_size, rnn, att_hid, stream_bytes, vmem_budget)
    b_pad = _round_up(max(B, tile_b), tile_b)

    hs = jnp.asarray(h, stream_dtype)
    afs = jnp.asarray(att_feats, stream_dtype)
    pfs = jnp.asarray(p_att_feats, stream_dtype)
    if b_pad != B:
        pad = b_pad - B
        hs = jnp.pad(hs, ((0, pad), (0, 0)))
        afs = jnp.pad(afs, ((0, pad), (0, 0), (0, 0)))
        pfs = jnp.pad(pfs, ((0, pad), (0, 0), (0, 0)))

    # NOTE: production rnn_size / att_hid_size (512) are multiples of 128, so
    # lane density is already fine there; we deliberately do NOT pad tiny last
    # dims (as in the demo shapes) since that would inflate HBM traffic in a
    # bandwidth-bound kernel.
    # NOTE: the constant-index weight blocks are still default double-buffered;
    # pipeline_mode=pl.Buffered(1) would recover one w_h tile of VMEM if tile_b
    # ever needs squeezing against the v7x limit.
    grid_spec = pltpu.PrefetchScalarGridSpec(
        num_scalar_prefetch=0,
        grid=(b_pad // tile_b,),
        in_specs=[
            pl.BlockSpec((tile_b, rnn),               lambda b: (b, 0)),
            pl.BlockSpec((tile_b, att_size, rnn),     lambda b: (b, 0, 0)),
            pl.BlockSpec((tile_b, att_size, att_hid), lambda b: (b, 0, 0)),
            pl.BlockSpec((rnn, att_hid),              lambda b: (0, 0)),
            pl.BlockSpec((1, att_hid),                lambda b: (0, 0)),
            pl.BlockSpec((1, att_hid),                lambda b: (0, 0)),
        ],
        out_specs=pl.BlockSpec((tile_b, rnn), lambda b: (b, 0)),
    )

    out = pl.pallas_call(
        attention_kernel,
        out_shape=jax.ShapeDtypeStruct((b_pad, rnn), jnp.float32),
        grid_spec=grid_spec,
        compiler_params=pltpu.CompilerParams(
            dimension_semantics=("parallel",),
            vmem_limit_bytes=vmem_limit),
    )(hs, afs, pfs, w_h, b_h, w_a)
    return out[:B]


def attention_reference(h, att_feats, p_att_feats, w_h2att, b_h2att, w_alpha, b_alpha):
    att_h = h @ w_h2att.T + b_h2att                                        # (B, att_hid)
    dot = jnp.tanh(p_att_feats + att_h[:, None, :])                        # (B, att_size, att_hid)
    score = jnp.einsum("bkh,oh->bko", dot, w_alpha)[..., 0] + b_alpha[0]   # (B, att_size)
    weight = jax.nn.softmax(score, axis=-1)
    return jnp.einsum("bk,bkd->bd", weight, att_feats)


if __name__ == "__main__":
    # Small shapes consistent with the module: rnn_size=32, att_hid_size=32,
    # batch=2, att_size=8.
    B, att_size, rnn_size, att_hid_size = 2, 8, 32, 32

    key = jax.random.PRNGKey(0)
    k1, k2, k3, k4, k5, k6, k7 = jax.random.split(key, 7)

    h = jax.random.normal(k1, (B, rnn_size), dtype=jnp.float32)
    att_feats = jax.random.normal(k2, (B, att_size, rnn_size), dtype=jnp.float32)
    p_att_feats = jax.random.normal(k3, (B, att_size, att_hid_size), dtype=jnp.float32)

    # Deterministic parameter init (shapes follow nn.Linear in __init__).
    w_h2att = jax.random.normal(k4, (att_hid_size, rnn_size), dtype=jnp.float32) * 0.1
    b_h2att = jax.random.normal(k5, (att_hid_size,), dtype=jnp.float32) * 0.1
    w_alpha = jax.random.normal(k6, (1, att_hid_size), dtype=jnp.float32) * 0.1
    b_alpha = jax.random.normal(k7, (1,), dtype=jnp.float32) * 0.1

    ref = attention_reference(h, att_feats, p_att_feats,
                              w_h2att, b_h2att, w_alpha, b_alpha)

    # f32-streaming path: only approximation is the EUP reciprocal in softmax.
    out_f32 = attention_forward(h, att_feats, p_att_feats,
                                w_h2att, b_h2att, w_alpha, b_alpha,
                                stream_dtype=jnp.float32)
    out_f32 = jax.block_until_ready(out_f32)
    assert out_f32.shape == (B, rnn_size)
    assert jnp.allclose(out_f32, ref, atol=2e-3, rtol=2e-3), "f32 path mismatch"

    # bf16-streaming path (production default): halves HBM traffic; tolerance
    # widened for bf16 rounding of the streamed features/weights.
    out_bf16 = attention_forward(h, att_feats, p_att_feats,
                                 w_h2att, b_h2att, w_alpha, b_alpha,
                                 stream_dtype=jnp.bfloat16)
    out_bf16 = jax.block_until_ready(out_bf16)
    assert out_bf16.shape == (B, rnn_size)
    assert jnp.allclose(out_bf16, ref, atol=3e-2, rtol=3e-2), "bf16 path mismatch"

    print("KERNEL_OK")
</pallas_src>

<mosaic_0001>
module attributes {stable_mosaic.version = 11 : i64} {
  func.func @attention_kernel(%arg0: i32, %arg1: memref<8x32xf32, #tpu.memory_space<vmem>>, %arg2: memref<8x8x32xf32, #tpu.memory_space<vmem>>, %arg3: memref<8x8x32xf32, #tpu.memory_space<vmem>>, %arg4: memref<32x32xf32, #tpu.memory_space<vmem>>, %arg5: memref<1x32xf32, #tpu.memory_space<vmem>>, %arg6: memref<1x32xf32, #tpu.memory_space<vmem>>, %arg7: memref<8x32xf32, #tpu.memory_space<vmem>>) attributes {dimension_semantics = [#tpu.dimension_semantics<parallel>], iteration_bounds = array<i64: 1>, scalar_prefetch = 0 : i64, scratch_operands = 0 : i64, tpu.core_type = #tpu.core_type<tc>, window_params = [{transform_indices = @transform_0, window_bounds = array<i64: 8, 32>}, {transform_indices = @transform_1, window_bounds = array<i64: 8, 8, 32>}, {transform_indices = @transform_2, window_bounds = array<i64: 8, 8, 32>}, {pipeline_mode = #tpu.pipeline_mode<synchronous>, transform_indices = @transform_3, window_bounds = array<i64: 32, 32>}, {pipeline_mode = #tpu.pipeline_mode<synchronous>, transform_indices = @transform_4, window_bounds = array<i64: 1, 32>}, {pipeline_mode = #tpu.pipeline_mode<synchronous>, transform_indices = @transform_5, window_bounds = array<i64: 1, 32>}, {transform_indices = @transform_6, window_bounds = array<i64: 8, 32>}]} {
    %c0 = arith.constant 0 : index
    %c0_0 = arith.constant 0 : index
    %0 = vector.load %arg1[%c0, %c0_0] : memref<8x32xf32, #tpu.memory_space<vmem>>, vector<8x32xf32>
    %c0_1 = arith.constant 0 : index
    %c0_2 = arith.constant 0 : index
    %1 = vector.load %arg4[%c0_1, %c0_2] : memref<32x32xf32, #tpu.memory_space<vmem>>, vector<32x32xf32>
    %cst = arith.constant dense<0.000000e+00> : vector<8x32xf32>
    %2 = tpu.matmul %0, %1, %cst {dimension_numbers = #tpu.dot_dimension_numbers<[1], [0], [0], [1], [0, 0, 1, 1], [], []>} : vector<8x32xf32>, vector<32x32xf32>, vector<8x32xf32> -> vector<8x32xf32>
    %c0_3 = arith.constant 0 : index
    %c0_4 = arith.constant 0 : index
    %3 = vector.load %arg5[%c0_3, %c0_4] : memref<1x32xf32, #tpu.memory_space<vmem>>, vector<1x32xf32>
    %4 = vector.broadcast %3 : vector<1x32xf32> to vector<8x32xf32>
    %5 = arith.addf %2, %4 : vector<8x32xf32>
    %c0_5 = arith.constant 0 : index
    %c0_6 = arith.constant 0 : index
    %c0_7 = arith.constant 0 : index
    %6 = vector.load %arg3[%c0_5, %c0_6, %c0_7] : memref<8x8x32xf32, #tpu.memory_space<vmem>>, vector<8x8x32xf32>
    %7 = vector.shape_cast %5 : vector<8x32xf32> to vector<8x1x32xf32>
    %8 = vector.broadcast %7 : vector<8x1x32xf32> to vector<8x8x32xf32>
    %9 = arith.addf %6, %8 : vector<8x8x32xf32>
    %10 = math.tanh %9 : vector<8x8x32xf32>
    %c0_8 = arith.constant 0 : index
    %c0_9 = arith.constant 0 : index
    %11 = vector.load %arg6[%c0_8, %c0_9] : memref<1x32xf32, #tpu.memory_space<vmem>>, vector<1x32xf32>
    %12 = vector.shape_cast %11 : vector<1x32xf32> to vector<1x1x32xf32>
    %13 = vector.broadcast %12 : vector<1x1x32xf32> to vector<8x8x32xf32>
    %14 = arith.mulf %10, %13 : vector<8x8x32xf32>
    %cst_10 = arith.constant dense<0.000000e+00> : vector<8x8xf32>
    %15 = vector.multi_reduction <add>, %14, %cst_10 [2] : vector<8x8x32xf32> to vector<8x8xf32>
    %cst_11 = arith.constant dense<0xFF800000> : vector<8xf32>
    %16 = vector.multi_reduction <maximumf>, %15, %cst_11 [1] : vector<8x8xf32> to vector<8xf32>
    %17 = vector.shape_cast %16 : vector<8xf32> to vector<8x1xf32>
    %18 = vector.broadcast %17 : vector<8x1xf32> to vector<8x8xf32>
    %19 = arith.subf %15, %18 : vector<8x8xf32>
    %20 = math.exp %19 : vector<8x8xf32>
    %cst_12 = arith.constant dense<0.000000e+00> : vector<8xf32>
    %21 = vector.multi_reduction <add>, %20, %cst_12 [1] : vector<8x8xf32> to vector<8xf32>
    %22 = vector.shape_cast %21 : vector<8xf32> to vector<8x1xf32>
    %23 = tpu.reciprocal %22 {approx = true} : vector<8x1xf32> -> vector<8x1xf32>
    %24 = vector.broadcast %23 : vector<8x1xf32> to vector<8x8xf32>
    %25 = arith.mulf %20, %24 : vector<8x8xf32>
    %26 = vector.shape_cast %25 : vector<8x8xf32> to vector<8x1x8xf32>
    %c0_13 = arith.constant 0 : index
    %c0_14 = arith.constant 0 : index
    %c0_15 = arith.constant 0 : index
    %27 = vector.load %arg2[%c0_13, %c0_14, %c0_15] : memref<8x8x32xf32, #tpu.memory_space<vmem>>, vector<8x8x32xf32>
    "tpu.trace_start"() <{level = 10 : i32, message = "bqk,bkd->bqd"}> : () -> ()
    %cst_16 = arith.constant dense<0.000000e+00> : vector<8x1x32xf32>
    %28 = tpu.matmul %26, %27, %cst_16 {dimension_numbers = #tpu.dot_dimension_numbers<[2], [1], [1], [2], [0, 0, 0, 1, 1, 2], [0], [0]>} : vector<8x1x8xf32>, vector<8x8x32xf32>, vector<8x1x32xf32> -> vector<8x1x32xf32>
    "tpu.trace_stop"() : () -> ()
    %29 = vector.shape_cast %28 : vector<8x1x32xf32> to vector<8x32xf32>
    %c0_17 = arith.constant 0 : index
    %c0_18 = arith.constant 0 : index
    %30 = vector.load %arg7[%c0_17, %c0_18] : memref<8x32xf32, #tpu.memory_space<vmem>>, vector<8x32xf32>
    tpu.vector_store %arg7[%c0_17, %c0_18], %29 {strides = array<i32>} : memref<8x32xf32, #tpu.memory_space<vmem>>, vector<8x32xf32>,
    return
  }
  func.func @transform_0(%arg0: i32) -> (i32, i32) {
    %c0_i32 = arith.constant 0 : i32
    %c0_i32_0 = arith.constant 0 : i32
    return %arg0, %c0_i32 : i32, i32
  }
  func.func @transform_1(%arg0: i32) -> (i32, i32, i32) {
    %c0_i32 = arith.constant 0 : i32
    %c0_i32_0 = arith.constant 0 : i32
    %c0_i32_1 = arith.constant 0 : i32
    return %arg0, %c0_i32, %c0_i32_0 : i32, i32, i32
  }
  func.func @transform_2(%arg0: i32) -> (i32, i32, i32) {
    %c0_i32 = arith.constant 0 : i32
    %c0_i32_0 = arith.constant 0 : i32
    %c0_i32_1 = arith.constant 0 : i32
    return %arg0, %c0_i32, %c0_i32_0 : i32, i32, i32
  }
  func.func @transform_3(%arg0: i32) -> (i32, i32) {
    %c0_i32 = arith.constant 0 : i32
    %c0_i32_0 = arith.constant 0 : i32
    %c0_i32_1 = arith.constant 0 : i32
    return %c0_i32, %c0_i32_0 : i32, i32
  }
  func.func @transform_4(%arg0: i32) -> (i32, i32) {
    %c0_i32 = arith.constant 0 : i32
    %c0_i32_0 = arith.constant 0 : i32
    %c0_i32_1 = arith.constant 0 : i32
    return %c0_i32, %c0_i32_0 : i32, i32
  }
  func.func @transform_5(%arg0: i32) -> (i32, i32) {
    %c0_i32 = arith.constant 0 : i32
    %c0_i32_0 = arith.constant 0 : i32
    %c0_i32_1 = arith.constant 0 : i32
    return %c0_i32, %c0_i32_0 : i32, i32
  }
  func.func @transform_6(%arg0: i32) -> (i32, i32) {
    %c0_i32 = arith.constant 0 : i32
    %c0_i32_0 = arith.constant 0 : i32
    return %arg0, %c0_i32 : i32, i32
  }
}

</mosaic_0001>

<llo_original>
// kernel: tpu_custom_call.1
$region0: #{tpu_custom_call.1}
  #allocation0 [shape = 'u32[]', space=smem, size = 0x4, offset = 0x4, fixed_abs, tag = 'smem constant byte address 0x4 - core index']
  #allocation1 [shape = 'u32[144,128]{1,0:T(1,128)}', space=vmem, size = 0x12000, scoped, tag = 'internal scratch']
  %s0 = inlined_call_operand.hbm [shape: f32[8,32], index: 0, kind: input, shape index: {}]
  %s1 = inlined_call_operand.hbm [shape: f32[8,8,32], index: 1, kind: input, shape index: {}]
  %s2 = inlined_call_operand.hbm [shape: f32[8,8,32], index: 2, kind: input, shape index: {}]
  %s3 = inlined_call_operand.hbm [shape: f32[32,32], index: 3, kind: input, shape index: {}]
  %s4 = inlined_call_operand.vmem [shape: f32[1,32], index: 4, kind: input, shape index: {}]
  %s5 = inlined_call_operand.vmem [shape: f32[1,32], index: 5, kind: input, shape index: {}]
  %s6 = inlined_call_operand.hbm [shape: f32[8,32], index: 6, kind: output, shape index: {}]
  %s7 = sld [smem:[#allocation0]]
  $region50: #{tpu_custom_call.1} parent=0
    _
  %s9 = ssub.s32 1, %s7
  %s10 = scalar_select 0, %s9, %s7
  $region1: #{tpu_custom_call.1} parent=0
    #allocation2 [shape = 'u8[4096]{0}', space=vmem, size = 0x1000, scoped, tag = 'input window, operand 0, single buffered']
    #allocation3 [shape = 's32[1]{0}', space=sflag, size = 0x4, scoped, tag = 'scoped memory for tpu_custom_call.1']
    #allocation4 [shape = 's32[1]{0}', space=sflag, size = 0x4, scoped, tag = 'scoped memory for tpu_custom_call.1']
    #allocation5 [shape = 'u8[32768]{0}', space=vmem, size = 0x8000, scoped, tag = 'input window, operand 1, single buffered']
    #allocation6 [shape = 's32[1]{0}', space=sflag, size = 0x4, scoped, tag = 'scoped memory for tpu_custom_call.1']
    #allocation7 [shape = 'u8[32768]{0}', space=vmem, size = 0x8000, scoped, tag = 'input window, operand 2, single buffered']
    #allocation8 [shape = 'u8[16384]{0}', space=vmem, size = 0x4000, scoped, tag = 'input window, operand 3, single buffered']
    #allocation9 [shape = 's32[1]{0}', space=sflag, size = 0x4, scoped, tag = 'scoped memory for tpu_custom_call.1']
    #allocation10 [shape = 'u8[4096]{0}', space=vmem, size = 0x1000, scoped, tag = 'output window, operand 0, single buffered']
    %11 = vsyncpa [#allocation3], 0
    %12 = vsyncpa [#allocation6], 0
    %13 = vsyncpa [#allocation9], 0
    %14 = vsyncpa [#allocation4], 0
    // Predicated region
    $region2: #{tpu_custom_call.1} parent=1 // pred_check
      _
    $region3: #{tpu_custom_call.1} parent=1 // pred_check_branch
      %16 = sbr.rel (0) target = $region5
    $region4: #{tpu_custom_call.1} parent=1 // pred_region
      %s18 = ssub.s32 128, 128
      %19 = vsyncadd [#allocation3], %s18
      %s21 = sshll.u32 [#allocation2], 4
      %s22 = int_to_ptr.vmem [resolvable:$true] %s21
      %24 = dma.hbm_to_vmem [thread:$0]  %s0, 128, %s22, [#allocation3]
    $region5: #{tpu_custom_call.1} parent=1 // pred_fallthru
      _
    // Predicated region
    $region6: #{tpu_custom_call.1} parent=1 // pred_check
      _
    $region7: #{tpu_custom_call.1} parent=1 // pred_check_branch
      %26 = sbr.rel (0) target = $region9
    $region8: #{tpu_custom_call.1} parent=1 // pred_region
      %s28 = ssub.s32 1024, 1024
      %29 = vsyncadd [#allocation6], %s28
      %s30 = sshll.u32 [#allocation5], 4
      %s31 = int_to_ptr.vmem [resolvable:$true] %s30
      %36 = dma.hbm_to_vmem [thread:$0]  %s1, 1024, %s31, [#allocation6], 128, 128, 8
    $region9: #{tpu_custom_call.1} parent=1 // pred_fallthru
      _
    // Predicated region
    $region10: #{tpu_custom_call.1} parent=1 // pred_check
      _
    $region11: #{tpu_custom_call.1} parent=1 // pred_check_branch
      %38 = sbr.rel (0) target = $region13
    $region12: #{tpu_custom_call.1} parent=1 // pred_region
      %s40 = ssub.s32 1024, 1024
      %41 = vsyncadd [#allocation6], %s40
      %s42 = sshll.u32 [#allocation7], 4
      %s43 = int_to_ptr.vmem [resolvable:$true] %s42
      %48 = dma.hbm_to_vmem [thread:$0]  %s2, 1024, %s43, [#allocation6], 128, 128, 8
    $region13: #{tpu_custom_call.1} parent=1 // pred_fallthru
      _
    // Predicated region
    $region14: #{tpu_custom_call.1} parent=1 // pred_check
      _
    $region15: #{tpu_custom_call.1} parent=1 // pred_check_branch
      %50 = sbr.rel (0) target = $region17
    $region16: #{tpu_custom_call.1} parent=1 // pred_region
      %s52 = ssub.s32 512, 512
      %53 = vsyncadd [#allocation9], %s52
      %s54 = sshll.u32 [#allocation8], 4
      %s55 = int_to_ptr.vmem [resolvable:$true] %s54
      %60 = dma.hbm_to_vmem [thread:$0]  %s3, 512, %s55, [#allocation9], 128, 128, 8
    $region17: #{tpu_custom_call.1} parent=1 // pred_fallthru
      _
    // Predicated region
    $region18: #{tpu_custom_call.1} parent=1 // pred_check
      _
    $region19: #{tpu_custom_call.1} parent=1 // pred_check_branch
      %62 = sbr.rel (0) target = $region21
    $region20: #{tpu_custom_call.1} parent=1 // pred_region
      _
    $region21: #{tpu_custom_call.1} parent=1 // pred_fallthru
      _
    // Predicated region
    $region22: #{tpu_custom_call.1} parent=1 // pred_check
      _
    $region23: #{tpu_custom_call.1} parent=1 // pred_check_branch
      %64 = sbr.rel (0) target = $region25
    $region24: #{tpu_custom_call.1} parent=1 // pred_region
      _
    $region25: #{tpu_custom_call.1} parent=1 // pred_fallthru
      _
    // Predicated region
    $region26: #{tpu_custom_call.1} parent=1 // pred_check
      _
    $region27: #{tpu_custom_call.1} parent=1 // pred_check_branch
      %66 = sbr.rel (0) target = $region29
    $region28: #{tpu_custom_call.1} parent=1 // pred_region
      %67 = dma.done [#allocation3], 128
    $region29: #{tpu_custom_call.1} parent=1 // pred_fallthru
      _
    // Predicated region
    $region30: #{tpu_custom_call.1} parent=1 // pred_check
      _
    $region31: #{tpu_custom_call.1} parent=1 // pred_check_branch
      %69 = sbr.rel (0) target = $region33
    $region32: #{tpu_custom_call.1} parent=1 // pred_region
      %70 = dma.done [#allocation6], 1024
    $region33: #{tpu_custom_call.1} parent=1 // pred_fallthru
      _
    // Predicated region
    $region34: #{tpu_custom_call.1} parent=1 // pred_check
      _
    $region35: #{tpu_custom_call.1} parent=1 // pred_check_branch
      %72 = sbr.rel (0) target = $region37
    $region36: #{tpu_custom_call.1} parent=1 // pred_region
      %73 = dma.done [#allocation6], 1024
    $region37: #{tpu_custom_call.1} parent=1 // pred_fallthru
      _
    // Predicated region
    $region38: #{tpu_custom_call.1} parent=1 // pred_check
      _
    $region39: #{tpu_custom_call.1} parent=1 // pred_check_branch
      %75 = sbr.rel (0) target = $region41
    $region40: #{tpu_custom_call.1} parent=1 // pred_region
      %76 = dma.done [#allocation9], 512
    $region41: #{tpu_custom_call.1} parent=1 // pred_fallthru
      _
    %v77 = vld [vmem:[#allocation2] sm:$0xff]
    %v78 = vld [vmem:[#allocation8] sm:$0xff]
    %v79 = vld [vmem:[#allocation8 + $0x8] sm:$0xff]
    %v80 = vld [vmem:[#allocation8 + $0x10] sm:$0xff]
    %v81 = vld [vmem:[#allocation8 + $0x18] sm:$0xff]
    %v82 = vld [vmem:[%s4] sm:$0x1]
    %v84 = vlaneseq
    %v85 = vshrl.u32 %v84, 7
    %v86 = vsub.s32 0, %v85
    %v87 = vrot.slane %v82, %v86
    %vm89 = vcmask 261120
    %v91 = vsel %vm89, %v77, 0
    %93 = vmatprep.subr.mxu0 0.0
    %94 = vmatpush1.msra.mxu0 0.0
    %95 = vmatprep.subr.mxu0 0.0
    %96 = vmatpush1.msra.mxu0 0.0
    %97 = vmatprep.subr.mxu0 0.0
    %98 = vmatpush1.msra.mxu0 0.0
    %99 = vmatprep.subr.mxu0 0.0
    %100 = vmatpush1.msra.mxu0 0.0
    %101 = vmatprep.subr.mxu0 0.0
    %102 = vmatpush1.msra.mxu0 0.0
    %103 = vmatprep.subr.mxu0 0.0
    %104 = vmatpush1.msra.mxu0 0.0
    %105 = vmatprep.subr.mxu0 0.0
    %106 = vmatpush1.msra.mxu0 0.0
    %107 = vmatprep.subr.mxu0 0.0
    %108 = vmatpush1.msra.mxu0 0.0
    %109 = vmatprep.subr.mxu0 0.0
    %110 = vmatpush1.msra.mxu0 0.0
    %111 = vmatprep.subr.mxu0 0.0
    %112 = vmatpush1.msra.mxu0 0.0
    %113 = vmatprep.subr.mxu0 0.0
    %114 = vmatpush1.msra.mxu0 0.0
    %115 = vmatprep.subr.mxu0 0.0
    %116 = vmatpush1.msra.mxu0 0.0
    %117 = vmatprep.subr.mxu0 0.0
    %118 = vmatpush1.msra.mxu0 %v81
    %119 = vmatprep.subr.mxu0 0.0
    %120 = vmatpush1.msra.mxu0 %v80
    %121 = vmatprep.subr.mxu0 0.0
    %122 = vmatpush1.msra.mxu0 %v79
    %123 = vmatprep.subr.mxu0 0.0
    %124 = vmatpush1.msra.mxu0 %v78
    %125 = vmatprep.subr.mxu0 0.0
    %126 = vmatpush2.msra.mxu0 0.0
    %127 = vmatprep.subr.mxu0 0.0
    %128 = vmatpush2.msra.mxu0 0.0
    %129 = vmatprep.subr.mxu0 0.0
    %130 = vmatpush2.msra.mxu0 0.0
    %131 = vmatprep.subr.mxu0 0.0
    %132 = vmatpush2.msra.mxu0 0.0
    %133 = vmatprep.subr.mxu0 0.0
    %134 = vmatpush2.msra.mxu0 0.0
    %135 = vmatprep.subr.mxu0 0.0
    %136 = vmatpush2.msra.mxu0 0.0
    %137 = vmatprep.subr.mxu0 0.0
    %138 = vmatpush2.msra.mxu0 0.0
    %139 = vmatprep.subr.mxu0 0.0
    %140 = vmatpush2.msra.mxu0 0.0
    %141 = vmatprep.subr.mxu0 0.0
    %142 = vmatpush2.msra.mxu0 0.0
    %143 = vmatprep.subr.mxu0 0.0
    %144 = vmatpush2.msra.mxu0 0.0
    %145 = vmatprep.subr.mxu0 0.0
    %146 = vmatpush2.msra.mxu0 0.0
    %147 = vmatprep.subr.mxu0 0.0
    %148 = vmatpush2.msra.mxu0 0.0
    %149 = vmatprep.subr.mxu0 0.0
    %150 = vmatpush2.msra.mxu0 0.0
    %151 = vmatprep.subr.mxu0 0.0
    %152 = vmatpush2.msra.mxu0 0.0
    %153 = vmatprep.subr.mxu0 0.0
    %154 = vmatpush2.msra.mxu0 0.0
    %155 = vmatprep.subr.mxu0 0.0
    %156 = vmatpush2.msra.mxu0 0.0
    %157 = vmatprep.mubr.f32.mxu0 0.0
    %158 = vmatmul.mubr.f32.gmra.mxu0 %v91
    %v159 = vpop.f32.mrf.mxu0
    %v160 = vadd.f32 %v87, %v159
    %v161 = vpop.f32.mrf.mxu0
    %162 = vdwg.mxu0
    %v163 = vld [vmem:[#allocation7] sm:$0xff]
    %v164 = vld [vmem:[#allocation7 + $0x8] sm:$0xff]
    %v165 = vld [vmem:[#allocation7 + $0x10] sm:$0xff]
    %v166 = vld [vmem:[#allocation7 + $0x18] sm:$0xff]
    %v167 = vld [vmem:[#allocation7 + $0x20] sm:$0xff]
    %v168 = vld [vmem:[#allocation7 + $0x28] sm:$0xff]
    %v169 = vld [vmem:[#allocation7 + $0x30] sm:$0xff]
    %v170 = vld [vmem:[#allocation7 + $0x38] sm:$0xff]
    %v172 = vcombine.high %v160, %v160
    %v174 = vunpack.c.l.s4 1966171168
    %v175 = vunpack.c.0.s8 %v174
    %v176 = vlaneseq
    %v177 = vshrl.u32 %v176, 7
    %v178 = vsub.s32 %v175, %v177
    %v179 = vrot.slane %v160, %v178
    %v181 = vunpack.c.l.s4 1966171168
    %v182 = vunpack.c.0.s8 %v181
    %v183 = vlaneseq
    %v184 = vshrl.u32 %v183, 7
    %v185 = vsub.s32 %v182, %v184
    %v186 = vrot.slane %v172, %v185
    %v187 = vcombine.high %v179, %v179
    %v188 = vcombine.high %v186, %v186
    %v190 = vunpack.c.l.s4 1966171168
    %v191 = vunpack.c.0.s8 %v190
    %v192 = vlaneseq
    %v193 = vshrl.u32 %v192, 7
    %v194 = vsub.s32 %v191, %v193
    %v195 = vrot.slane %v179, %v194
    %v197 = vunpack.c.l.s4 1966171168
    %v198 = vunpack.c.0.s8 %v197
    %v199 = vlaneseq
    %v200 = vshrl.u32 %v199, 7
    %v201 = vsub.s32 %v198, %v200
    %v202 = vrot.slane %v186, %v201
    %v204 = vunpack.c.l.s4 1966171168
    %v205 = vunpack.c.0.s8 %v204
    %v206 = vlaneseq
    %v207 = vshrl.u32 %v206, 7
    %v208 = vsub.s32 %v205, %v207
    %v209 = vrot.slane %v187, %v208
    %v211 = vunpack.c.l.s4 1966171168
    %v212 = vunpack.c.0.s8 %v211
    %v213 = vlaneseq
    %v214 = vshrl.u32 %v213, 7
    %v215 = vsub.s32 %v212, %v214
    %v216 = vrot.slane %v188, %v215
    %v217 = vcombine.high %v195, %v195
    %v218 = vcombine.high %v202, %v202
    %v219 = vcombine.high %v209, %v209
    %v220 = vcombine.high %v216, %v216
    %v221 = vlaneseq
    %v222 = vshrl.u32 %v221, 7
    %v223 = vsub.s32 0, %v222
    %v224 = vrot.slane %v195, %v223
    %v225 = vlaneseq
    %v226 = vshrl.u32 %v225, 7
    %v227 = vsub.s32 0, %v226
    %v228 = vrot.slane %v209, %v227
    %v229 = vlaneseq
    %v230 = vshrl.u32 %v229, 7
    %v231 = vsub.s32 0, %v230
    %v232 = vrot.slane %v217, %v231
    %v233 = vlaneseq
    %v234 = vshrl.u32 %v233, 7
    %v235 = vsub.s32 0, %v234
    %v236 = vrot.slane %v219, %v235
    %v237 = vlaneseq
    %v238 = vshrl.u32 %v237, 7
    %v239 = vsub.s32 0, %v238
    %v240 = vrot.slane %v202, %v239
    %v241 = vlaneseq
    %v242 = vshrl.u32 %v241, 7
    %v243 = vsub.s32 0, %v242
    %v244 = vrot.slane %v216, %v243
    %v245 = vlaneseq
    %v246 = vshrl.u32 %v245, 7
    %v247 = vsub.s32 0, %v246
    %v248 = vrot.slane %v218, %v247
    %v249 = vlaneseq
    %v250 = vshrl.u32 %v249, 7
    %v251 = vsub.s32 0, %v250
    %v252 = vrot.slane %v220, %v251
    %v261 = vadd.f32 %v163, %v224
    %v262 = vadd.f32 %v164, %v228
    %v263 = vadd.f32 %v165, %v232
    %v264 = vadd.f32 %v166, %v236
    %v265 = vadd.f32 %v167, %v240
    %v266 = vadd.f32 %v168, %v244
    %v267 = vadd.f32 %v169, %v248
    %v268 = vadd.f32 %v170, %v252
    %v269 = vtanh.pop %v261
    %v270 = vtanh.pop %v262
    %v271 = vtanh.pop %v263
    %v272 = vtanh.pop %v264
    %v273 = vtanh.pop %v265
    %v274 = vtanh.pop %v266
    %v275 = vtanh.pop %v267
    %v276 = vtanh.pop %v268
    %v277 = vld [vmem:[%s5] sm:$0x1]
    %v279 = vlaneseq
    %v280 = vshrl.u32 %v279, 7
    %v281 = vsub.s32 0, %v280
    %v282 = vrot.slane %v277, %v281
    %v284 = vmul.f32 %v269, %v282
    %v285 = vmul.f32 %v270, %v282
    %v286 = vmul.f32 %v271, %v282
    %v287 = vmul.f32 %v272, %v282
    %v288 = vmul.f32 %v273, %v282
    %v289 = vmul.f32 %v274, %v282
    %v290 = vmul.f32 %v275, %v282
    %v291 = vmul.f32 %v276, %v282
    %v292 = vsel %vm89, %v284, 0.0
    %293 = vadd.xlane.f32.xlu0 %v292
    %v294 = vpop.xlane.xlu0 %293
    %v295 = vsel %vm89, %v285, 0.0
    %296 = vadd.xlane.f32.xlu0 %v295
    %v297 = vpop.xlane.xlu0 %296
    %v298 = vsel %vm89, %v286, 0.0
    %299 = vadd.xlane.f32.xlu0 %v298
    %v300 = vpop.xlane.xlu0 %299
    %v301 = vsel %vm89, %v287, 0.0
    %302 = vadd.xlane.f32.xlu0 %v301
    %v303 = vpop.xlane.xlu0 %302
    %v304 = vsel %vm89, %v288, 0.0
    %305 = vadd.xlane.f32.xlu0 %v304
    %v306 = vpop.xlane.xlu0 %305
    %v307 = vsel %vm89, %v289, 0.0
    %308 = vadd.xlane.f32.xlu0 %v307
    %v309 = vpop.xlane.xlu0 %308
    %v310 = vsel %vm89, %v290, 0.0
    %311 = vadd.xlane.f32.xlu0 %v310
    %v312 = vpop.xlane.xlu0 %311
    %v313 = vsel %vm89, %v291, 0.0
    %314 = vadd.xlane.f32.xlu0 %v313
    %v315 = vpop.xlane.xlu0 %314
    %v324 = vlaneseq
    %v325 = vand.u32 %v324, 127
    %v326 = vlaneseq
    %v327 = vshrl.u32 %v326, 7
    %v328 = vsub.s32 %v325, %v327
    %v329 = vrot.slane %v294, %v328
    %v330 = vlaneseq
    %v331 = vshrl.u32 %v330, 7
    %v332 = vsub.s32 %v325, %v331
    %v333 = vrot.slane %v297, %v332
    %v334 = vlaneseq
    %v335 = vshrl.u32 %v334, 7
    %v336 = vsub.s32 %v325, %v335
    %v337 = vrot.slane %v300, %v336
    %v338 = vlaneseq
    %v339 = vshrl.u32 %v338, 7
    %v340 = vsub.s32 %v325, %v339
    %v341 = vrot.slane %v303, %v340
    %v342 = vlaneseq
    %v343 = vshrl.u32 %v342, 7
    %v344 = vsub.s32 %v325, %v343
    %v345 = vrot.slane %v306, %v344
    %v346 = vlaneseq
    %v347 = vshrl.u32 %v346, 7
    %v348 = vsub.s32 %v325, %v347
    %v349 = vrot.slane %v309, %v348
    %v350 = vlaneseq
    %v351 = vshrl.u32 %v350, 7
    %v352 = vsub.s32 %v325, %v351
    %v353 = vrot.slane %v312, %v352
    %v354 = vlaneseq
    %v355 = vshrl.u32 %v354, 7
    %v356 = vsub.s32 %v325, %v355
    %v357 = vrot.slane %v315, %v356
    %vm358 = vcmask 1041409
    %v359 = vsel %vm358, %v333, %v329
    %vm360 = vcmask 1042434
    %v361 = vsel %vm360, %v337, %v359
    %vm362 = vcmask 1043459
    %v363 = vsel %vm362, %v341, %v361
    %vm364 = vcmask 1044484
    %v365 = vsel %vm364, %v345, %v363
    %vm366 = vcmask 1045509
    %v367 = vsel %vm366, %v349, %v365
    %vm368 = vcmask 1046534
    %v369 = vsel %vm368, %v353, %v367
    %vm370 = vcmask 1047559
    %v371 = vsel %vm370, %v357, %v369
    %vm373 = vcmask 64512
    %v374 = vsel %vm373, %v371, -inf
    %375 = vmax.xlane.f32.xlu0 %v374
    %v376 = vpop.xlane.xlu0 %375
    %v378 = vlaneseq
    %v379 = vshrl.u32 %v378, 7
    %v380 = vsub.s32 0, %v379
    %v381 = vrot.slane %v376, %v380
    %v382 = vlaneseq
    %v383 = vshrl.u32 %v382, 7
    %v384 = vsub.s32 1, %v383
    %v385 = vrot.slane %v376, %v384
    %v386 = vlaneseq
    %v387 = vshrl.u32 %v386, 7
    %v388 = vsub.s32 2, %v387
    %v389 = vrot.slane %v376, %v388
    %v390 = vlaneseq
    %v391 = vshrl.u32 %v390, 7
    %v392 = vsub.s32 3, %v391
    %v393 = vrot.slane %v376, %v392
    %v394 = vlaneseq
    %v395 = vshrl.u32 %v394, 7
    %v396 = vsub.s32 4, %v395
    %v397 = vrot.slane %v376, %v396
    %v398 = vlaneseq
    %v399 = vshrl.u32 %v398, 7
    %v400 = vsub.s32 5, %v399
    %v401 = vrot.slane %v376, %v400
    %v402 = vlaneseq
    %v403 = vshrl.u32 %v402, 7
    %v404 = vsub.s32 6, %v403
    %v405 = vrot.slane %v376, %v404
    %v406 = vlaneseq
    %v407 = vshrl.u32 %v406, 7
    %v408 = vsub.s32 7, %v407
    %v409 = vrot.slane %v376, %v408
    %v418 = vsub.f32 %v294, %v381
    %v419 = vsub.f32 %v297, %v385
    %v420 = vsub.f32 %v300, %v389
    %v421 = vsub.f32 %v303, %v393
    %v422 = vsub.f32 %v306, %v397
    %v423 = vsub.f32 %v309, %v401
    %v424 = vsub.f32 %v312, %v405
    %v425 = vsub.f32 %v315, %v409
    %v426 = vmul.f32 %v418, 1.442695
    %v427 = vpow.pop %v426
    %v428 = vmul.f32 %v419, 1.442695
    %v429 = vpow.pop %v428
    %v430 = vmul.f32 %v420, 1.442695
    %v431 = vpow.pop %v430
    %v432 = vmul.f32 %v421, 1.442695
    %v433 = vpow.pop %v432
    %v434 = vmul.f32 %v422, 1.442695
    %v435 = vpow.pop %v434
    %v436 = vmul.f32 %v423, 1.442695
    %v437 = vpow.pop %v436
    %v438 = vmul.f32 %v424, 1.442695
    %v439 = vpow.pop %v438
    %v440 = vmul.f32 %v425, 1.442695
    %v441 = vpow.pop %v440
    %450 = vset.pattern.permute.xlu0 0
    %451 = vperm.xlu0 %450, %v427
    %v452 = vpop.permute.xlu0 %451
    %453 = vset.pattern.permute.xlu0 0
    %454 = vperm.xlu0 %453, %v429
    %v455 = vpop.permute.xlu0 %454
    %456 = vset.pattern.permute.xlu0 0
    %457 = vperm.xlu0 %456, %v431
    %v458 = vpop.permute.xlu0 %457
    %459 = vset.pattern.permute.xlu0 0
    %460 = vperm.xlu0 %459, %v433
    %v461 = vpop.permute.xlu0 %460
    %462 = vset.pattern.permute.xlu0 0
    %463 = vperm.xlu0 %462, %v435
    %v464 = vpop.permute.xlu0 %463
    %465 = vset.pattern.permute.xlu0 0
    %466 = vperm.xlu0 %465, %v437
    %v467 = vpop.permute.xlu0 %466
    %468 = vset.pattern.permute.xlu0 0
    %469 = vperm.xlu0 %468, %v439
    %v470 = vpop.permute.xlu0 %469
    %471 = vset.pattern.permute.xlu0 0
    %472 = vperm.xlu0 %471, %v441
    %v473 = vpop.permute.xlu0 %472
    %v474 = vlaneseq
    %v475 = vshrl.u32 %v474, 7
    %v476 = vsub.s32 %v325, %v475
    %v477 = vrot.slane %v452, %v476
    %v478 = vlaneseq
    %v479 = vshrl.u32 %v478, 7
    %v480 = vsub.s32 %v325, %v479
    %v481 = vrot.slane %v455, %v480
    %v482 = vlaneseq
    %v483 = vshrl.u32 %v482, 7
    %v484 = vsub.s32 %v325, %v483
    %v485 = vrot.slane %v458, %v484
    %v486 = vlaneseq
    %v487 = vshrl.u32 %v486, 7
    %v488 = vsub.s32 %v325, %v487
    %v489 = vrot.slane %v461, %v488
    %v490 = vlaneseq
    %v491 = vshrl.u32 %v490, 7
    %v492 = vsub.s32 %v325, %v491
    %v493 = vrot.slane %v464, %v492
    %v494 = vlaneseq
    %v495 = vshrl.u32 %v494, 7
    %v496 = vsub.s32 %v325, %v495
    %v497 = vrot.slane %v467, %v496
    %v498 = vlaneseq
    %v499 = vshrl.u32 %v498, 7
    %v500 = vsub.s32 %v325, %v499
    %v501 = vrot.slane %v470, %v500
    %v502 = vlaneseq
    %v503 = vshrl.u32 %v502, 7
    %v504 = vsub.s32 %v325, %v503
    %v505 = vrot.slane %v473, %v504
    %v506 = vsel %vm358, %v481, %v477
    %v507 = vsel %vm360, %v485, %v506
    %v508 = vsel %vm362, %v489, %v507
    %v509 = vsel %vm364, %v493, %v508
    %v510 = vsel %vm366, %v497, %v509
    %v511 = vsel %vm368, %v501, %v510
    %v512 = vsel %vm370, %v505, %v511
    %v514 = vsel %vm373, %v512, 0.0
    %515 = vadd.xlane.f32.xlu0 %v514
    %v516 = vpop.xlane.xlu0 %515
    %v517 = vrcp.pop %v516
    %v519 = vlaneseq
    %v520 = vshrl.u32 %v519, 7
    %v521 = vsub.s32 0, %v520
    %v522 = vrot.slane %v517, %v521
    %v523 = vlaneseq
    %v524 = vshrl.u32 %v523, 7
    %v525 = vsub.s32 1, %v524
    %v526 = vrot.slane %v517, %v525
    %v527 = vlaneseq
    %v528 = vshrl.u32 %v527, 7
    %v529 = vsub.s32 2, %v528
    %v530 = vrot.slane %v517, %v529
    %v531 = vlaneseq
    %v532 = vshrl.u32 %v531, 7
    %v533 = vsub.s32 3, %v532
    %v534 = vrot.slane %v517, %v533
    %v535 = vlaneseq
    %v536 = vshrl.u32 %v535, 7
    %v537 = vsub.s32 4, %v536
    %v538 = vrot.slane %v517, %v537
    %v539 = vlaneseq
    %v540 = vshrl.u32 %v539, 7
    %v541 = vsub.s32 5, %v540
    %v542 = vrot.slane %v517, %v541
    %v543 = vlaneseq
    %v544 = vshrl.u32 %v543, 7
    %v545 = vsub.s32 6, %v544
    %v546 = vrot.slane %v517, %v545
    %v547 = vlaneseq
    %v548 = vshrl.u32 %v547, 7
    %v549 = vsub.s32 7, %v548
    %v550 = vrot.slane %v517, %v549
    %v559 = vmul.f32 %v427, %v522
    %v560 = vmul.f32 %v429, %v526
    %v561 = vmul.f32 %v431, %v530
    %v562 = vmul.f32 %v433, %v534
    %v563 = vmul.f32 %v435, %v538
    %v564 = vmul.f32 %v437, %v542
    %v565 = vmul.f32 %v439, %v546
    %v566 = vmul.f32 %v441, %v550
    %v567 = vld [vmem:[#allocation5] sm:$0xff]
    %v568 = vld [vmem:[#allocation5 + $0x8] sm:$0xff]
    %v569 = vld [vmem:[#allocation5 + $0x10] sm:$0xff]
    %v570 = vld [vmem:[#allocation5 + $0x18] sm:$0xff]
    %v571 = vld [vmem:[#allocation5 + $0x20] sm:$0xff]
    %v572 = vld [vmem:[#allocation5 + $0x28] sm:$0xff]
    %v573 = vld [vmem:[#allocation5 + $0x30] sm:$0xff]
    %v574 = vld [vmem:[#allocation5 + $0x38] sm:$0xff]
    %576 = vset.pattern.permute.xlu0 0
    %577 = vperm.xlu0 %576, %v559
    %v578 = vpop.permute.xlu0 %577
    %v579 = vlaneseq
    %v580 = vshrl.u32 %v579, 7
    %v581 = vsub.s32 %v325, %v580
    %v582 = vrot.slane %v578, %v581
    %v583 = vsel %vm373, %v582, 0
    %585 = vmatprep.subr.mxu0 0.0
    %586 = vmatpush1.msra.mxu0 0.0
    %587 = vmatprep.subr.mxu0 0.0
    %588 = vmatpush1.msra.mxu0 0.0
    %589 = vmatprep.subr.mxu0 0.0
    %590 = vmatpush1.msra.mxu0 0.0
    %591 = vmatprep.subr.mxu0 0.0
    %592 = vmatpush1.msra.mxu0 0.0
    %593 = vmatprep.subr.mxu0 0.0
    %594 = vmatpush1.msra.mxu0 0.0
    %595 = vmatprep.subr.mxu0 0.0
    %596 = vmatpush1.msra.mxu0 0.0
    %597 = vmatprep.subr.mxu0 0.0
    %598 = vmatpush1.msra.mxu0 0.0
    %599 = vmatprep.subr.mxu0 0.0
    %600 = vmatpush1.msra.mxu0 0.0
    %601 = vmatprep.subr.mxu0 0.0
    %602 = vmatpush1.msra.mxu0 0.0
    %603 = vmatprep.subr.mxu0 0.0
    %604 = vmatpush1.msra.mxu0 0.0
    %605 = vmatprep.subr.mxu0 0.0
    %606 = vmatpush1.msra.mxu0 0.0
    %607 = vmatprep.subr.mxu0 0.0
    %608 = vmatpush1.msra.mxu0 0.0
    %609 = vmatprep.subr.mxu0 0.0
    %610 = vmatpush1.msra.mxu0 0.0
    %611 = vmatprep.subr.mxu0 0.0
    %612 = vmatpush1.msra.mxu0 0.0
    %613 = vmatprep.subr.mxu0 0.0
    %614 = vmatpush1.msra.mxu0 0.0
    %615 = vmatprep.subr.mxu0 0.0
    %616 = vmatpush1.msra.mxu0 %v567
    %617 = vmatprep.subr.mxu0 0.0
    %618 = vmatpush2.msra.mxu0 0.0
    %619 = vmatprep.subr.mxu0 0.0
    %620 = vmatpush2.msra.mxu0 0.0
    %621 = vmatprep.subr.mxu0 0.0
    %622 = vmatpush2.msra.mxu0 0.0
    %623 = vmatprep.subr.mxu0 0.0
    %624 = vmatpush2.msra.mxu0 0.0
    %625 = vmatprep.subr.mxu0 0.0
    %626 = vmatpush2.msra.mxu0 0.0
    %627 = vmatprep.subr.mxu0 0.0
    %628 = vmatpush2.msra.mxu0 0.0
    %629 = vmatprep.subr.mxu0 0.0
    %630 = vmatpush2.msra.mxu0 0.0
    %631 = vmatprep.subr.mxu0 0.0
    %632 = vmatpush2.msra.mxu0 0.0
    %633 = vmatprep.subr.mxu0 0.0
    %634 = vmatpush2.msra.mxu0 0.0
    %635 = vmatprep.subr.mxu0 0.0
    %636 = vmatpush2.msra.mxu0 0.0
    %637 = vmatprep.subr.mxu0 0.0
    %638 = vmatpush2.msra.mxu0 0.0
    %639 = vmatprep.subr.mxu0 0.0
    %640 = vmatpush2.msra.mxu0 0.0
    %641 = vmatprep.subr.mxu0 0.0
    %642 = vmatpush2.msra.mxu0 0.0
    %643 = vmatprep.subr.mxu0 0.0
    %644 = vmatpush2.msra.mxu0 0.0
    %645 = vmatprep.subr.mxu0 0.0
    %646 = vmatpush2.msra.mxu0 0.0
    %647 = vmatprep.subr.mxu0 0.0
    %648 = vmatpush2.msra.mxu0 0.0
    %649 = vmatprep.mubr.f32.mxu0 0.0
    %650 = vmatmul.mubr.f32.gmra.mxu0 %v583
    %v651 = vpop.f32.mrf.mxu0
    %v652 = vadd.f32 0.0, %v651
    %v653 = vpop.f32.mrf.mxu0
    %654 = vdwg.mxu0
    %656 = vset.pattern.permute.xlu0 0
    %657 = vperm.xlu0 %656, %v560
    %v658 = vpop.permute.xlu0 %657
    %v659 = vlaneseq
    %v660 = vshrl.u32 %v659, 7
    %v661 = vsub.s32 %v325, %v660
    %v662 = vrot.slane %v658, %v661
    %v663 = vsel %vm373, %v662, 0
    %665 = vmatprep.subr.mxu0 0.0
    %666 = vmatpush1.msra.mxu0 0.0
    %667 = vmatprep.subr.mxu0 0.0
    %668 = vmatpush1.msra.mxu0 0.0
    %669 = vmatprep.subr.mxu0 0.0
    %670 = vmatpush1.msra.mxu0 0.0
    %671 = vmatprep.subr.mxu0 0.0
    %672 = vmatpush1.msra.mxu0 0.0
    %673 = vmatprep.subr.mxu0 0.0
    %674 = vmatpush1.msra.mxu0 0.0
    %675 = vmatprep.subr.mxu0 0.0
    %676 = vmatpush1.msra.mxu0 0.0
    %677 = vmatprep.subr.mxu0 0.0
    %678 = vmatpush1.msra.mxu0 0.0
    %679 = vmatprep.subr.mxu0 0.0
    %680 = vmatpush1.msra.mxu0 0.0
    %681 = vmatprep.subr.mxu0 0.0
    %682 = vmatpush1.msra.mxu0 0.0
    %683 = vmatprep.subr.mxu0 0.0
    %684 = vmatpush1.msra.mxu0 0.0
    %685 = vmatprep.subr.mxu0 0.0
    %686 = vmatpush1.msra.mxu0 0.0
    %687 = vmatprep.subr.mxu0 0.0
    %688 = vmatpush1.msra.mxu0 0.0
    %689 = vmatprep.subr.mxu0 0.0
    %690 = vmatpush1.msra.mxu0 0.0
    %691 = vmatprep.subr.mxu0 0.0
    %692 = vmatpush1.msra.mxu0 0.0
    %693 = vmatprep.subr.mxu0 0.0
    %694 = vmatpush1.msra.mxu0 0.0
    %695 = vmatprep.subr.mxu0 0.0
    %696 = vmatpush1.msra.mxu0 %v568
    %697 = vmatprep.subr.mxu0 0.0
    %698 = vmatpush2.msra.mxu0 0.0
    %699 = vmatprep.subr.mxu0 0.0
    %700 = vmatpush2.msra.mxu0 0.0
    %701 = vmatprep.subr.mxu0 0.0
    %702 = vmatpush2.msra.mxu0 0.0
    %703 = vmatprep.subr.mxu0 0.0
    %704 = vmatpush2.msra.mxu0 0.0
    %705 = vmatprep.subr.mxu0 0.0
    %706 = vmatpush2.msra.mxu0 0.0
    %707 = vmatprep.subr.mxu0 0.0
    %708 = vmatpush2.msra.mxu0 0.0
    %709 = vmatprep.subr.mxu0 0.0
    %710 = vmatpush2.msra.mxu0 0.0
    %711 = vmatprep.subr.mxu0 0.0
    %712 = vmatpush2.msra.mxu0 0.0
    %713 = vmatprep.subr.mxu0 0.0
    %714 = vmatpush2.msra.mxu0 0.0
    %715 = vmatprep.subr.mxu0 0.0
    %716 = vmatpush2.msra.mxu0 0.0
    %717 = vmatprep.subr.mxu0 0.0
    %718 = vmatpush2.msra.mxu0 0.0
    %719 = vmatprep.subr.mxu0 0.0
    %720 = vmatpush2.msra.mxu0 0.0
    %721 = vmatprep.subr.mxu0 0.0
    %722 = vmatpush2.msra.mxu0 0.0
    %723 = vmatprep.subr.mxu0 0.0
    %724 = vmatpush2.msra.mxu0 0.0
    %725 = vmatprep.subr.mxu0 0.0
    %726 = vmatpush2.msra.mxu0 0.0
    %727 = vmatprep.subr.mxu0 0.0
    %728 = vmatpush2.msra.mxu0 0.0
    %729 = vmatprep.mubr.f32.mxu0 0.0
    %730 = vmatmul.mubr.f32.gmra.mxu0 %v663
    %v731 = vpop.f32.mrf.mxu0
    %v732 = vadd.f32 0.0, %v731
    %v733 = vpop.f32.mrf.mxu0
    %734 = vdwg.mxu0
    %736 = vset.pattern.permute.xlu0 0
    %737 = vperm.xlu0 %736, %v561
    %v738 = vpop.permute.xlu0 %737
    %v739 = vlaneseq
    %v740 = vshrl.u32 %v739, 7
    %v741 = vsub.s32 %v325, %v740
    %v742 = vrot.slane %v738, %v741
    %v743 = vsel %vm373, %v742, 0
    %745 = vmatprep.subr.mxu0 0.0
    %746 = vmatpush1.msra.mxu0 0.0
    %747 = vmatprep.subr.mxu0 0.0
    %748 = vmatpush1.msra.mxu0 0.0
    %749 = vmatprep.subr.mxu0 0.0
    %750 = vmatpush1.msra.mxu0 0.0
    %751 = vmatprep.subr.mxu0 0.0
    %752 = vmatpush1.msra.mxu0 0.0
    %753 = vmatprep.subr.mxu0 0.0
    %754 = vmatpush1.msra.mxu0 0.0
    %755 = vmatprep.subr.mxu0 0.0
    %756 = vmatpush1.msra.mxu0 0.0
    %757 = vmatprep.subr.mxu0 0.0
    %758 = vmatpush1.msra.mxu0 0.0
    %759 = vmatprep.subr.mxu0 0.0
    %760 = vmatpush1.msra.mxu0 0.0
    %761 = vmatprep.subr.mxu0 0.0
    %762 = vmatpush1.msra.mxu0 0.0
    %763 = vmatprep.subr.mxu0 0.0
    %764 = vmatpush1.msra.mxu0 0.0
    %765 = vmatprep.subr.mxu0 0.0
    %766 = vmatpush1.msra.mxu0 0.0
    %767 = vmatprep.subr.mxu0 0.0
    %768 = vmatpush1.msra.mxu0 0.0
    %769 = vmatprep.subr.mxu0 0.0
    %770 = vmatpush1.msra.mxu0 0.0
    %771 = vmatprep.subr.mxu0 0.0
    %772 = vmatpush1.msra.mxu0 0.0
    %773 = vmatprep.subr.mxu0 0.0
    %774 = vmatpush1.msra.mxu0 0.0
    %775 = vmatprep.subr.mxu0 0.0
    %776 = vmatpush1.msra.mxu0 %v569
    %777 = vmatprep.subr.mxu0 0.0
    %778 = vmatpush2.msra.mxu0 0.0
    %779 = vmatprep.subr.mxu0 0.0
    %780 = vmatpush2.msra.mxu0 0.0
    %781 = vmatprep.subr.mxu0 0.0
    %782 = vmatpush2.msra.mxu0 0.0
    %783 = vmatprep.subr.mxu0 0.0
    %784 = vmatpush2.msra.mxu0 0.0
    %785 = vmatprep.subr.mxu0 0.0
    %786 = vmatpush2.msra.mxu0 0.0
    %787 = vmatprep.subr.mxu0 0.0
    %788 = vmatpush2.msra.mxu0 0.0
    %789 = vmatprep.subr.mxu0 0.0
    %790 = vmatpush2.msra.mxu0 0.0
    %791 = vmatprep.subr.mxu0 0.0
    %792 = vmatpush2.msra.mxu0 0.0
    %793 = vmatprep.subr.mxu0 0.0
    %794 = vmatpush2.msra.mxu0 0.0
    %795 = vmatprep.subr.mxu0 0.0
    %796 = vmatpush2.msra.mxu0 0.0
    %797 = vmatprep.subr.mxu0 0.0
    %798 = vmatpush2.msra.mxu0 0.0
    %799 = vmatprep.subr.mxu0 0.0
    %800 = vmatpush2.msra.mxu0 0.0
    %801 = vmatprep.subr.mxu0 0.0
    %802 = vmatpush2.msra.mxu0 0.0
    %803 = vmatprep.subr.mxu0 0.0
    %804 = vmatpush2.msra.mxu0 0.0
    %805 = vmatprep.subr.mxu0 0.0
    %806 = vmatpush2.msra.mxu0 0.0
    %807 = vmatprep.subr.mxu0 0.0
    %808 = vmatpush2.msra.mxu0 0.0
    %809 = vmatprep.mubr.f32.mxu0 0.0
    %810 = vmatmul.mubr.f32.gmra.mxu0 %v743
    %v811 = vpop.f32.mrf.mxu0
    %v812 = vadd.f32 0.0, %v811
    %v813 = vpop.f32.mrf.mxu0
    %814 = vdwg.mxu0
    %816 = vset.pattern.permute.xlu0 0
    %817 = vperm.xlu0 %816, %v562
    %v818 = vpop.permute.xlu0 %817
    %v819 = vlaneseq
    %v820 = vshrl.u32 %v819, 7
    %v821 = vsub.s32 %v325, %v820
    %v822 = vrot.slane %v818, %v821
    %v823 = vsel %vm373, %v822, 0
    %825 = vmatprep.subr.mxu0 0.0
    %826 = vmatpush1.msra.mxu0 0.0
    %827 = vmatprep.subr.mxu0 0.0
    %828 = vmatpush1.msra.mxu0 0.0
    %829 = vmatprep.subr.mxu0 0.0
    %830 = vmatpush1.msra.mxu0 0.0
    %831 = vmatprep.subr.mxu0 0.0
    %832 = vmatpush1.msra.mxu0 0.0
    %833 = vmatprep.subr.mxu0 0.0
    %834 = vmatpush1.msra.mxu0 0.0
    %835 = vmatprep.subr.mxu0 0.0
    %836 = vmatpush1.msra.mxu0 0.0
    %837 = vmatprep.subr.mxu0 0.0
    %838 = vmatpush1.msra.mxu0 0.0
    %839 = vmatprep.subr.mxu0 0.0
    %840 = vmatpush1.msra.mxu0 0.0
    %841 = vmatprep.subr.mxu0 0.0
    %842 = vmatpush1.msra.mxu0 0.0
    %843 = vmatprep.subr.mxu0 0.0
    %844 = vmatpush1.msra.mxu0 0.0
    %845 = vmatprep.subr.mxu0 0.0
    %846 = vmatpush1.msra.mxu0 0.0
    %847 = vmatprep.subr.mxu0 0.0
    %848 = vmatpush1.msra.mxu0 0.0
    %849 = vmatprep.subr.mxu0 0.0
    %850 = vmatpush1.msra.mxu0 0.0
    %851 = vmatprep.subr.mxu0 0.0
    %852 = vmatpush1.msra.mxu0 0.0
    %853 = vmatprep.subr.mxu0 0.0
    %854 = vmatpush1.msra.mxu0 0.0
    %855 = vmatprep.subr.mxu0 0.0
    %856 = vmatpush1.msra.mxu0 %v570
    %857 = vmatprep.subr.mxu0 0.0
    %858 = vmatpush2.msra.mxu0 0.0
    %859 = vmatprep.subr.mxu0 0.0
    %860 = vmatpush2.msra.mxu0 0.0
    %861 = vmatprep.subr.mxu0 0.0
    %862 = vmatpush2.msra.mxu0 0.0
    %863 = vmatprep.subr.mxu0 0.0
    %864 = vmatpush2.msra.mxu0 0.0
    %865 = vmatprep.subr.mxu0 0.0
    %866 = vmatpush2.msra.mxu0 0.0
    %867 = vmatprep.subr.mxu0 0.0
    %868 = vmatpush2.msra.mxu0 0.0
    %869 = vmatprep.subr.mxu0 0.0
    %870 = vmatpush2.msra.mxu0 0.0
    %871 = vmatprep.subr.mxu0 0.0
    %872 = vmatpush2.msra.mxu0 0.0
    %873 = vmatprep.subr.mxu0 0.0
    %874 = vmatpush2.msra.mxu0 0.0
    %875 = vmatprep.subr.mxu0 0.0
    %876 = vmatpush2.msra.mxu0 0.0
    %877 = vmatprep.subr.mxu0 0.0
    %878 = vmatpush2.msra.mxu0 0.0
    %879 = vmatprep.subr.mxu0 0.0
    %880 = vmatpush2.msra.mxu0 0.0
    %881 = vmatprep.subr.mxu0 0.0
    %882 = vmatpush2.msra.mxu0 0.0
    %883 = vmatprep.subr.mxu0 0.0
    %884 = vmatpush2.msra.mxu0 0.0
    %885 = vmatprep.subr.mxu0 0.0
    %886 = vmatpush2.msra.mxu0 0.0
    %887 = vmatprep.subr.mxu0 0.0
    %888 = vmatpush2.msra.mxu0 0.0
    %889 = vmatprep.mubr.f32.mxu0 0.0
    %890 = vmatmul.mubr.f32.gmra.mxu0 %v823
    %v891 = vpop.f32.mrf.mxu0
    %v892 = vadd.f32 0.0, %v891
    %v893 = vpop.f32.mrf.mxu0
    %894 = vdwg.mxu0
    %896 = vset.pattern.permute.xlu0 0
    %897 = vperm.xlu0 %896, %v563
    %v898 = vpop.permute.xlu0 %897
    %v899 = vlaneseq
    %v900 = vshrl.u32 %v899, 7
    %v901 = vsub.s32 %v325, %v900
    %v902 = vrot.slane %v898, %v901
    %v903 = vsel %vm373, %v902, 0
    %905 = vmatprep.subr.mxu0 0.0
    %906 = vmatpush1.msra.mxu0 0.0
    %907 = vmatprep.subr.mxu0 0.0
    %908 = vmatpush1.msra.mxu0 0.0
    %909 = vmatprep.subr.mxu0 0.0
    %910 = vmatpush1.msra.mxu0 0.0
    %911 = vmatprep.subr.mxu0 0.0
    %912 = vmatpush1.msra.mxu0 0.0
    %913 = vmatprep.subr.mxu0 0.0
    %914 = vmatpush1.msra.mxu0 0.0
    %915 = vmatprep.subr.mxu0 0.0
    %916 = vmatpush1.msra.mxu0 0.0
    %917 = vmatprep.subr.mxu0 0.0
    %918 = vmatpush1.msra.mxu0 0.0
    %919 = vmatprep.subr.mxu0 0.0
    %920 = vmatpush1.msra.mxu0 0.0
    %921 = vmatprep.subr.mxu0 0.0
    %922 = vmatpush1.msra.mxu0 0.0
    %923 = vmatprep.subr.mxu0 0.0
    %924 = vmatpush1.msra.mxu0 0.0
    %925 = vmatprep.subr.mxu0 0.0
    %926 = vmatpush1.msra.mxu0 0.0
    %927 = vmatprep.subr.mxu0 0.0
    %928 = vmatpush1.msra.mxu0 0.0
    %929 = vmatprep.subr.mxu0 0.0
    %930 = vmatpush1.msra.mxu0 0.0
    %931 = vmatprep.subr.mxu0 0.0
    %932 = vmatpush1.msra.mxu0 0.0
    %933 = vmatprep.subr.mxu0 0.0
    %934 = vmatpush1.msra.mxu0 0.0
    %935 = vmatprep.subr.mxu0 0.0
    %936 = vmatpush1.msra.mxu0 %v571
    %937 = vmatprep.subr.mxu0 0.0
    %938 = vmatpush2.msra.mxu0 0.0
    %939 = vmatprep.subr.mxu0 0.0
    %940 = vmatpush2.msra.mxu0 0.0
    %941 = vmatprep.subr.mxu0 0.0
    %942 = vmatpush2.msra.mxu0 0.0
    %943 = vmatprep.subr.mxu0 0.0
    %944 = vmatpush2.msra.mxu0 0.0
    %945 = vmatprep.subr.mxu0 0.0
    %946 = vmatpush2.msra.mxu0 0.0
    %947 = vmatprep.subr.mxu0 0.0
    %948 = vmatpush2.msra.mxu0 0.0
    %949 = vmatprep.subr.mxu0 0.0
    %950 = vmatpush2.msra.mxu0 0.0
    %951 = vmatprep.subr.mxu0 0.0
    %952 = vmatpush2.msra.mxu0 0.0
    %953 = vmatprep.subr.mxu0 0.0
    %954 = vmatpush2.msra.mxu0 0.0
    %955 = vmatprep.subr.mxu0 0.0
    %956 = vmatpush2.msra.mxu0 0.0
    %957 = vmatprep.subr.mxu0 0.0
    %958 = vmatpush2.msra.mxu0 0.0
    %959 = vmatprep.subr.mxu0 0.0
    %960 = vmatpush2.msra.mxu0 0.0
    %961 = vmatprep.subr.mxu0 0.0
    %962 = vmatpush2.msra.mxu0 0.0
    %963 = vmatprep.subr.mxu0 0.0
    %964 = vmatpush2.msra.mxu0 0.0
    %965 = vmatprep.subr.mxu0 0.0
    %966 = vmatpush2.msra.mxu0 0.0
    %967 = vmatprep.subr.mxu0 0.0
    %968 = vmatpush2.msra.mxu0 0.0
    %969 = vmatprep.mubr.f32.mxu0 0.0
    %970 = vmatmul.mubr.f32.gmra.mxu0 %v903
    %v971 = vpop.f32.mrf.mxu0
    %v972 = vadd.f32 0.0, %v971
    %v973 = vpop.f32.mrf.mxu0
    %974 = vdwg.mxu0
    %976 = vset.pattern.permute.xlu0 0
    %977 = vperm.xlu0 %976, %v564
    %v978 = vpop.permute.xlu0 %977
    %v979 = vlaneseq
    %v980 = vshrl.u32 %v979, 7
    %v981 = vsub.s32 %v325, %v980
    %v982 = vrot.slane %v978, %v981
    %v983 = vsel %vm373, %v982, 0
    %985 = vmatprep.subr.mxu0 0.0
    %986 = vmatpush1.msra.mxu0 0.0
    %987 = vmatprep.subr.mxu0 0.0
    %988 = vmatpush1.msra.mxu0 0.0
    %989 = vmatprep.subr.mxu0 0.0
    %990 = vmatpush1.msra.mxu0 0.0
    %991 = vmatprep.subr.mxu0 0.0
    %992 = vmatpush1.msra.mxu0 0.0
    %993 = vmatprep.subr.mxu0 0.0
    %994 = vmatpush1.msra.mxu0 0.0
    %995 = vmatprep.subr.mxu0 0.0
    %996 = vmatpush1.msra.mxu0 0.0
    %997 = vmatprep.subr.mxu0 0.0
    %998 = vmatpush1.msra.mxu0 0.0
    %999 = vmatprep.subr.mxu0 0.0
    %1000 = vmatpush1.msra.mxu0 0.0
    %1001 = vmatprep.subr.mxu0 0.0
    %1002 = vmatpush1.msra.mxu0 0.0
    %1003 = vmatprep.subr.mxu0 0.0
    %1004 = vmatpush1.msra.mxu0 0.0
    %1005 = vmatprep.subr.mxu0 0.0
    %1006 = vmatpush1.msra.mxu0 0.0
    %1007 = vmatprep.subr.mxu0 0.0
    %1008 = vmatpush1.msra.mxu0 0.0
    %1009 = vmatprep.subr.mxu0 0.0
    %1010 = vmatpush1.msra.mxu0 0.0
    %1011 = vmatprep.subr.mxu0 0.0
    %1012 = vmatpush1.msra.mxu0 0.0
    %1013 = vmatprep.subr.mxu0 0.0
    %1014 = vmatpush1.msra.mxu0 0.0
    %1015 = vmatprep.subr.mxu0 0.0
    %1016 = vmatpush1.msra.mxu0 %v572
    %1017 = vmatprep.subr.mxu0 0.0
    %1018 = vmatpush2.msra.mxu0 0.0
    %1019 = vmatprep.subr.mxu0 0.0
    %1020 = vmatpush2.msra.mxu0 0.0
    %1021 = vmatprep.subr.mxu0 0.0
    %1022 = vmatpush2.msra.mxu0 0.0
    %1023 = vmatprep.subr.mxu0 0.0
    %1024 = vmatpush2.msra.mxu0 0.0
    %1025 = vmatprep.subr.mxu0 0.0
    %1026 = vmatpush2.msra.mxu0 0.0
    %1027 = vmatprep.subr.mxu0 0.0
    %1028 = vmatpush2.msra.mxu0 0.0
    %1029 = vmatprep.subr.mxu0 0.0
    %1030 = vmatpush2.msra.mxu0 0.0
    %1031 = vmatprep.subr.mxu0 0.0
    %1032 = vmatpush2.msra.mxu0 0.0
    %1033 = vmatprep.subr.mxu0 0.0
    %1034 = vmatpush2.msra.mxu0 0.0
    %1035 = vmatprep.subr.mxu0 0.0
    %1036 = vmatpush2.msra.mxu0 0.0
    %1037 = vmatprep.subr.mxu0 0.0
    %1038 = vmatpush2.msra.mxu0 0.0
    %1039 = vmatprep.subr.mxu0 0.0
    %1040 = vmatpush2.msra.mxu0 0.0
    %1041 = vmatprep.subr.mxu0 0.0
    %1042 = vmatpush2.msra.mxu0 0.0
    %1043 = vmatprep.subr.mxu0 0.0
    %1044 = vmatpush2.msra.mxu0 0.0
    %1045 = vmatprep.subr.mxu0 0.0
    %1046 = vmatpush2.msra.mxu0 0.0
    %1047 = vmatprep.subr.mxu0 0.0
    %1048 = vmatpush2.msra.mxu0 0.0
    %1049 = vmatprep.mubr.f32.mxu0 0.0
    %1050 = vmatmul.mubr.f32.gmra.mxu0 %v983
    %v1051 = vpop.f32.mrf.mxu0
    %v1052 = vadd.f32 0.0, %v1051
    %v1053 = vpop.f32.mrf.mxu0
    %1054 = vdwg.mxu0
    %1056 = vset.pattern.permute.xlu0 0
    %1057 = vperm.xlu0 %1056, %v565
    %v1058 = vpop.permute.xlu0 %1057
    %v1059 = vlaneseq
    %v1060 = vshrl.u32 %v1059, 7
    %v1061 = vsub.s32 %v325, %v1060
    %v1062 = vrot.slane %v1058, %v1061
    %v1063 = vsel %vm373, %v1062, 0
    %1065 = vmatprep.subr.mxu0 0.0
    %1066 = vmatpush1.msra.mxu0 0.0
    %1067 = vmatprep.subr.mxu0 0.0
    %1068 = vmatpush1.msra.mxu0 0.0
    %1069 = vmatprep.subr.mxu0 0.0
    %1070 = vmatpush1.msra.mxu0 0.0
    %1071 = vmatprep.subr.mxu0 0.0
    %1072 = vmatpush1.msra.mxu0 0.0
    %1073 = vmatprep.subr.mxu0 0.0
    %1074 = vmatpush1.msra.mxu0 0.0
    %1075 = vmatprep.subr.mxu0 0.0
    %1076 = vmatpush1.msra.mxu0 0.0
    %1077 = vmatprep.subr.mxu0 0.0
    %1078 = vmatpush1.msra.mxu0 0.0
    %1079 = vmatprep.subr.mxu0 0.0
    %1080 = vmatpush1.msra.mxu0 0.0
    %1081 = vmatprep.subr.mxu0 0.0
    %1082 = vmatpush1.msra.mxu0 0.0
    %1083 = vmatprep.subr.mxu0 0.0
    %1084 = vmatpush1.msra.mxu0 0.0
    %1085 = vmatprep.subr.mxu0 0.0
    %1086 = vmatpush1.msra.mxu0 0.0
    %1087 = vmatprep.subr.mxu0 0.0
    %1088 = vmatpush1.msra.mxu0 0.0
    %1089 = vmatprep.subr.mxu0 0.0
    %1090 = vmatpush1.msra.mxu0 0.0
    %1091 = vmatprep.subr.mxu0 0.0
    %1092 = vmatpush1.msra.mxu0 0.0
    %1093 = vmatprep.subr.mxu0 0.0
    %1094 = vmatpush1.msra.mxu0 0.0
    %1095 = vmatprep.subr.mxu0 0.0
    %1096 = vmatpush1.msra.mxu0 %v573
    %1097 = vmatprep.subr.mxu0 0.0
    %1098 = vmatpush2.msra.mxu0 0.0
    %1099 = vmatprep.subr.mxu0 0.0
    %1100 = vmatpush2.msra.mxu0 0.0
    %1101 = vmatprep.subr.mxu0 0.0
    %1102 = vmatpush2.msra.mxu0 0.0
    %1103 = vmatprep.subr.mxu0 0.0
    %1104 = vmatpush2.msra.mxu0 0.0
    %1105 = vmatprep.subr.mxu0 0.0
    %1106 = vmatpush2.msra.mxu0 0.0
    %1107 = vmatprep.subr.mxu0 0.0
    %1108 = vmatpush2.msra.mxu0 0.0
    %1109 = vmatprep.subr.mxu0 0.0
    %1110 = vmatpush2.msra.mxu0 0.0
    %1111 = vmatprep.subr.mxu0 0.0
    %1112 = vmatpush2.msra.mxu0 0.0
    %1113 = vmatprep.subr.mxu0 0.0
    %1114 = vmatpush2.msra.mxu0 0.0
    %1115 = vmatprep.subr.mxu0 0.0
    %1116 = vmatpush2.msra.mxu0 0.0
    %1117 = vmatprep.subr.mxu0 0.0
    %1118 = vmatpush2.msra.mxu0 0.0
    %1119 = vmatprep.subr.mxu0 0.0
    %1120 = vmatpush2.msra.mxu0 0.0
    %1121 = vmatprep.subr.mxu0 0.0
    %1122 = vmatpush2.msra.mxu0 0.0
    %1123 = vmatprep.subr.mxu0 0.0
    %1124 = vmatpush2.msra.mxu0 0.0
    %1125 = vmatprep.subr.mxu0 0.0
    %1126 = vmatpush2.msra.mxu0 0.0
    %1127 = vmatprep.subr.mxu0 0.0
    %1128 = vmatpush2.msra.mxu0 0.0
    %1129 = vmatprep.mubr.f32.mxu0 0.0
    %1130 = vmatmul.mubr.f32.gmra.mxu0 %v1063
    %v1131 = vpop.f32.mrf.mxu0
    %v1132 = vadd.f32 0.0, %v1131
    %v1133 = vpop.f32.mrf.mxu0
    %1134 = vdwg.mxu0
    %1136 = vset.pattern.permute.xlu0 0
    %1137 = vperm.xlu0 %1136, %v566
    %v1138 = vpop.permute.xlu0 %1137
    %v1139 = vlaneseq
    %v1140 = vshrl.u32 %v1139, 7
    %v1141 = vsub.s32 %v325, %v1140
    %v1142 = vrot.slane %v1138, %v1141
    %v1143 = vsel %vm373, %v1142, 0
    %1145 = vmatprep.subr.mxu0 0.0
    %1146 = vmatpush1.msra.mxu0 0.0
    %1147 = vmatprep.subr.mxu0 0.0
    %1148 = vmatpush1.msra.mxu0 0.0
    %1149 = vmatprep.subr.mxu0 0.0
    %1150 = vmatpush1.msra.mxu0 0.0
    %1151 = vmatprep.subr.mxu0 0.0
    %1152 = vmatpush1.msra.mxu0 0.0
    %1153 = vmatprep.subr.mxu0 0.0
    %1154 = vmatpush1.msra.mxu0 0.0
    %1155 = vmatprep.subr.mxu0 0.0
    %1156 = vmatpush1.msra.mxu0 0.0
    %1157 = vmatprep.subr.mxu0 0.0
    %1158 = vmatpush1.msra.mxu0 0.0
    %1159 = vmatprep.subr.mxu0 0.0
    %1160 = vmatpush1.msra.mxu0 0.0
    %1161 = vmatprep.subr.mxu0 0.0
    %1162 = vmatpush1.msra.mxu0 0.0
    %1163 = vmatprep.subr.mxu0 0.0
    %1164 = vmatpush1.msra.mxu0 0.0
    %1165 = vmatprep.subr.mxu0 0.0
    %1166 = vmatpush1.msra.mxu0 0.0
    %1167 = vmatprep.subr.mxu0 0.0
    %1168 = vmatpush1.msra.mxu0 0.0
    %1169 = vmatprep.subr.mxu0 0.0
    %1170 = vmatpush1.msra.mxu0 0.0
    %1171 = vmatprep.subr.mxu0 0.0
    %1172 = vmatpush1.msra.mxu0 0.0
    %1173 = vmatprep.subr.mxu0 0.0
    %1174 = vmatpush1.msra.mxu0 0.0
    %1175 = vmatprep.subr.mxu0 0.0
    %1176 = vmatpush1.msra.mxu0 %v574
    %1177 = vmatprep.subr.mxu0 0.0
    %1178 = vmatpush2.msra.mxu0 0.0
    %1179 = vmatprep.subr.mxu0 0.0
    %1180 = vmatpush2.msra.mxu0 0.0
    %1181 = vmatprep.subr.mxu0 0.0
    %1182 = vmatpush2.msra.mxu0 0.0
    %1183 = vmatprep.subr.mxu0 0.0
    %1184 = vmatpush2.msra.mxu0 0.0
    %1185 = vmatprep.subr.mxu0 0.0
    %1186 = vmatpush2.msra.mxu0 0.0
    %1187 = vmatprep.subr.mxu0 0.0
    %1188 = vmatpush2.msra.mxu0 0.0
    %1189 = vmatprep.subr.mxu0 0.0
    %1190 = vmatpush2.msra.mxu0 0.0
    %1191 = vmatprep.subr.mxu0 0.0
    %1192 = vmatpush2.msra.mxu0 0.0
    %1193 = vmatprep.subr.mxu0 0.0
    %1194 = vmatpush2.msra.mxu0 0.0
    %1195 = vmatprep.subr.mxu0 0.0
    %1196 = vmatpush2.msra.mxu0 0.0
    %1197 = vmatprep.subr.mxu0 0.0
    %1198 = vmatpush2.msra.mxu0 0.0
    %1199 = vmatprep.subr.mxu0 0.0
    %1200 = vmatpush2.msra.mxu0 0.0
    %1201 = vmatprep.subr.mxu0 0.0
    %1202 = vmatpush2.msra.mxu0 0.0
    %1203 = vmatprep.subr.mxu0 0.0
    %1204 = vmatpush2.msra.mxu0 0.0
    %1205 = vmatprep.subr.mxu0 0.0
    %1206 = vmatpush2.msra.mxu0 0.0
    %1207 = vmatprep.subr.mxu0 0.0
    %1208 = vmatpush2.msra.mxu0 0.0
    %1209 = vmatprep.mubr.f32.mxu0 0.0
    %1210 = vmatmul.mubr.f32.gmra.mxu0 %v1143
    %v1211 = vpop.f32.mrf.mxu0
    %v1212 = vadd.f32 0.0, %v1211
    %v1213 = vpop.f32.mrf.mxu0
    %1214 = vdwg.mxu0
    %v1223 = vrot.slane %v732, 7
    %v1224 = vsel %vm358, %v1223, %v652
    %v1225 = vrot.slane %v812, 6
    %v1226 = vsel %vm360, %v1225, %v1224
    %v1227 = vrot.slane %v892, 5
    %v1228 = vsel %vm362, %v1227, %v1226
    %v1229 = vrot.slane %v972, 4
    %v1230 = vsel %vm364, %v1229, %v1228
    %v1231 = vrot.slane %v1052, 3
    %v1232 = vsel %vm366, %v1231, %v1230
    %v1233 = vrot.slane %v1132, 2
    %v1234 = vsel %vm368, %v1233, %v1232
    %v1235 = vrot.slane %v1212, 1
    %v1236 = vsel %vm370, %v1235, %v1234
    %1238 = vst.msk [vmem:[#allocation10] sm:$0xff] %vm89, %v1236
    // Predicated region
    $region42: #{tpu_custom_call.1} parent=1 // pred_check
      _
    $region43: #{tpu_custom_call.1} parent=1 // pred_check_branch
      %1240 = sbr.rel (0) target = $region45
    $region44: #{tpu_custom_call.1} parent=1 // pred_region
      %s1242 = ssub.s32 128, 128
      %1243 = vsyncadd [#allocation4], %s1242
      %s1245 = sshll.u32 [#allocation10], 4
      %s1246 = int_to_ptr.vmem [resolvable:$true] %s1245
      %1248 = dma.vmem_to_hbm [thread:$0]  %s1246, 128, %s6, [#allocation4]
    $region45: #{tpu_custom_call.1} parent=1 // pred_fallthru
      _
    // Predicated region
    $region46: #{tpu_custom_call.1} parent=1 // pred_check
      _
    $region47: #{tpu_custom_call.1} parent=1 // pred_check_branch
      %1250 = sbr.rel (0) target = $region49
    $region48: #{tpu_custom_call.1} parent=1 // pred_region
      %1251 = dma.done [#allocation4], 128
    $region49: #{tpu_custom_call.1} parent=1 // pred_fallthru
      _
    %1252 = vsyncpa [#allocation3], 1
    %1253 = vsyncpa [#allocation6], 1
    %1254 = vsyncpa [#allocation9], 1
    %1255 = vsyncpa [#allocation4], 1

</llo_original>
